<compile_context>
chip_gen: v5e
topology: v5e:2x2
jax: 0.10.0
libtpu: 0.0.40
codegen_flags: <defaults>
</compile_context>

<pallas_src>
import functools

import jax
import jax.numpy as jnp
from jax.experimental import pallas as pl
from jax.experimental.pallas import tpu as pltpu


def _round_up(n, m):
    return ((n + m - 1) // m) * m


def _disc_kernel(theta_ref, x_ref, w1t_ref, w1x_ref, b1_ref, w2_ref, b2_ref, o_ref):
    # theta_ref: (TM, theta_dim)   x_ref:   (TM, x_dim)
    # w1t_ref:   (theta_dim, H)    w1x_ref: (x_dim, H)    b1_ref: (1, H)
    # w2_ref:    (1, H)            b2_ref:  (1, 1)        o_ref:  (TM, 1)
    h = jnp.dot(theta_ref[...], w1t_ref[...], preferred_element_type=jnp.float32)
    h = h + jnp.dot(x_ref[...], w1x_ref[...], preferred_element_type=jnp.float32)
    h = jnp.maximum(h + b1_ref[...], 0.0)  # ReLU in f32 on the VPU

    # 128 -> 1 layer: VPU multiply + XLU lane-reduce; keeps the MXU slot free.
    logit = jnp.sum(h * w2_ref[...], axis=-1, keepdims=True) + b2_ref[...]

    # Numerically saturating sigmoid; exp + reciprocal both issue on the EUP slot.
    e = jnp.exp(-jnp.abs(logit))
    inv = pl.reciprocal(1.0 + e, approx=False)
    o_ref[...] = jnp.where(logit >= 0, inv, e * inv).astype(o_ref.dtype)


@functools.partial(jax.jit, static_argnames=("tile_m",))
def discriminator_forward(theta, x, params, *, tile_m=1024):
    """theta: (B, theta_dim), x: (B, x_dim) -> (B, 1) float32 probabilities."""
    w1, b1, w2, b2 = params
    B, theta_dim = theta.shape
    x_dim = x.shape[1]
    D = theta_dim + x_dim
    H = w1.shape[1]
    assert w1.shape[0] == D and x.shape[0] == B

    act_dtype = theta.dtype
    act_bytes = jnp.dtype(act_dtype).itemsize

    # Split W1 (free static slice) so activations never need to be concatenated in HBM.
    w1t = w1[:theta_dim, :].astype(act_dtype)
    w1x = w1[theta_dim:, :].astype(act_dtype)
    b1r = jnp.reshape(b1, (1, H)).astype(jnp.float32)
    w2r = jnp.reshape(w2, (1, H)).astype(jnp.float32)
    b2r = jnp.reshape(b2, (1, 1)).astype(jnp.float32)

    # Batch tile: multiple of 16 sublanes (covers f32 (8,128) and bf16 (16,128) tiling).
    tm = min(_round_up(tile_m, 16), _round_up(B, 16))
    b_pad = _round_up(B, tm)
    if b_pad != B:
        theta = jnp.pad(theta, ((0, b_pad - B), (0, 0)))
        x = jnp.pad(x, ((0, b_pad - B), (0, 0)))
    grid = (b_pad // tm,)

    # Resident-VMEM estimate: double-buffered activation/output tiles + resident weights
    # + the (tm, H) f32 intermediate. Request 2x with a 16 MiB floor and 32 MiB cap
    # (safe on v5e/v6e's 128 MiB and v7x's 64 MiB parts).
    est = (2 * tm * D * act_bytes + 2 * tm * 4
           + D * H * act_bytes + (2 * H + 1) * 4
           + 2 * tm * H * 4)
    vmem_limit = int(min(max(2 * est, 16 * 1024 * 1024), 32 * 1024 * 1024))

    cost = pl.CostEstimate(
        flops=2 * b_pad * D * H + 2 * b_pad * H,
        transcendentals=b_pad,
        bytes_accessed=b_pad * D * act_bytes + D * H * act_bytes + (2 * H + 1) * 4 + b_pad * 4,
    )

    const = lambda i: (0, 0)  # weights: fetched once, stay resident across batch tiles
    out = pl.pallas_call(
        _disc_kernel,
        out_shape=jax.ShapeDtypeStruct((b_pad, 1), jnp.float32),
        grid=grid,
        in_specs=[
            pl.BlockSpec((tm, theta_dim), lambda i: (i, 0)),
            pl.BlockSpec((tm, x_dim), lambda i: (i, 0)),
            pl.BlockSpec((theta_dim, H), const),
            pl.BlockSpec((x_dim, H), const),
            pl.BlockSpec((1, H), const),
            pl.BlockSpec((1, H), const),
            pl.BlockSpec((1, 1), const),
        ],
        out_specs=pl.BlockSpec((tm, 1), lambda i: (i, 0)),
        compiler_params=pltpu.CompilerParams(
            dimension_semantics=("parallel",),
            vmem_limit_bytes=vmem_limit,
        ),
        cost_estimate=cost,
    )(theta, x, w1t, w1x, b1r, w2r, b2r)
    # TODO(synk): for very large B a lane-dense (num_tiles, tm) output slab would avoid
    # the masked (tm, 1) stores; kept (B, 1) layout for simplicity since output bytes are tiny.
    return out[:B]


def init_params(key, theta_dim, x_dim, hidden=128):
    """Deterministic init matching nn.Linear shapes (uniform +/- 1/sqrt(fan_in))."""
    d_in = theta_dim + x_dim
    k1, k2, k3, k4 = jax.random.split(key, 4)
    lim1 = 1.0 / jnp.sqrt(d_in)
    lim2 = 1.0 / jnp.sqrt(hidden)
    # stored as (in, out) = transpose of PyTorch's (out, in)
    w1 = jax.random.uniform(k1, (d_in, hidden), jnp.float32, -lim1, lim1)
    b1 = jax.random.uniform(k2, (1, hidden), jnp.float32, -lim1, lim1)
    w2 = jax.random.uniform(k3, (hidden, 1), jnp.float32, -lim2, lim2)
    b2 = jax.random.uniform(k4, (1, 1), jnp.float32, -lim2, lim2)
    return w1, b1, w2, b2


if __name__ == "__main__":
    theta_dim, x_dim, batch = 4, 8, 37  # batch deliberately not a tile multiple
    key = jax.random.PRNGKey(0)
    kp, kt, kx = jax.random.split(key, 3)

    params = init_params(kp, theta_dim, x_dim)
    theta = jax.random.normal(kt, (batch, theta_dim), jnp.float32)
    x = jax.random.normal(kx, (batch, x_dim), jnp.float32)

    # small tile so the demo exercises the batch grid (3 tiles of 16) + padding path
    out = discriminator_forward(theta, x, params, tile_m=16)
    out = jax.block_until_ready(out)

    # reference in plain JAX (original concat formulation)
    w1, b1, w2, b2 = params
    z = jnp.concatenate([theta, x], axis=1)
    ref = jax.nn.sigmoid(jnp.maximum(z @ w1 + b1, 0.0) @ w2 + b2)

    assert out.shape == (batch, 1), f"bad shape {out.shape}"
    assert jnp.allclose(out, ref, atol=1e-5, rtol=1e-5), "mismatch vs reference"

    print("KERNEL_OK")
</pallas_src>

<mosaic_0001>
module attributes {stable_mosaic.version = 11 : i64} {
  func.func @_disc_kernel(%arg0: i32, %arg1: memref<16x4xf32, #tpu.memory_space<vmem>>, %arg2: memref<16x8xf32, #tpu.memory_space<vmem>>, %arg3: memref<4x128xf32, #tpu.memory_space<vmem>>, %arg4: memref<8x128xf32, #tpu.memory_space<vmem>>, %arg5: memref<1x128xf32, #tpu.memory_space<vmem>>, %arg6: memref<1x128xf32, #tpu.memory_space<vmem>>, %arg7: memref<1x1xf32, #tpu.memory_space<vmem>>, %arg8: memref<16x1xf32, #tpu.memory_space<vmem>>) attributes {dimension_semantics = [#tpu.dimension_semantics<parallel>], iteration_bounds = array<i64: 3>, scalar_prefetch = 0 : i64, scratch_operands = 0 : i64, tpu.core_type = #tpu.core_type<tc>, window_params = [{transform_indices = @transform_0, window_bounds = array<i64: 16, 4>}, {transform_indices = @transform_1, window_bounds = array<i64: 16, 8>}, {pipeline_mode = #tpu.pipeline_mode<synchronous>, transform_indices = @transform_2, window_bounds = array<i64: 4, 128>}, {pipeline_mode = #tpu.pipeline_mode<synchronous>, transform_indices = @transform_3, window_bounds = array<i64: 8, 128>}, {pipeline_mode = #tpu.pipeline_mode<synchronous>, transform_indices = @transform_4, window_bounds = array<i64: 1, 128>}, {pipeline_mode = #tpu.pipeline_mode<synchronous>, transform_indices = @transform_5, window_bounds = array<i64: 1, 128>}, {pipeline_mode = #tpu.pipeline_mode<synchronous>, transform_indices = @transform_6, window_bounds = array<i64: 1, 1>}, {transform_indices = @transform_7, window_bounds = array<i64: 16, 1>}]} {
    %c0 = arith.constant 0 : index
    %c0_0 = arith.constant 0 : index
    %0 = vector.load %arg1[%c0, %c0_0] : memref<16x4xf32, #tpu.memory_space<vmem>>, vector<16x4xf32>
    %c0_1 = arith.constant 0 : index
    %c0_2 = arith.constant 0 : index
    %1 = vector.load %arg3[%c0_1, %c0_2] : memref<4x128xf32, #tpu.memory_space<vmem>>, vector<4x128xf32>
    %cst = arith.constant dense<0.000000e+00> : vector<16x128xf32>
    %2 = tpu.matmul %0, %1, %cst {dimension_numbers = #tpu.dot_dimension_numbers<[1], [0], [0], [1], [0, 0, 1, 1], [], []>} : vector<16x4xf32>, vector<4x128xf32>, vector<16x128xf32> -> vector<16x128xf32>
    %c0_3 = arith.constant 0 : index
    %c0_4 = arith.constant 0 : index
    %3 = vector.load %arg2[%c0_3, %c0_4] : memref<16x8xf32, #tpu.memory_space<vmem>>, vector<16x8xf32>
    %c0_5 = arith.constant 0 : index
    %c0_6 = arith.constant 0 : index
    %4 = vector.load %arg4[%c0_5, %c0_6] : memref<8x128xf32, #tpu.memory_space<vmem>>, vector<8x128xf32>
    %cst_7 = arith.constant dense<0.000000e+00> : vector<16x128xf32>
    %5 = tpu.matmul %3, %4, %cst_7 {dimension_numbers = #tpu.dot_dimension_numbers<[1], [0], [0], [1], [0, 0, 1, 1], [], []>} : vector<16x8xf32>, vector<8x128xf32>, vector<16x128xf32> -> vector<16x128xf32>
    %6 = arith.addf %2, %5 : vector<16x128xf32>
    %c0_8 = arith.constant 0 : index
    %c0_9 = arith.constant 0 : index
    %7 = vector.load %arg5[%c0_8, %c0_9] : memref<1x128xf32, #tpu.memory_space<vmem>>, vector<1x128xf32>
    %8 = vector.broadcast %7 : vector<1x128xf32> to vector<16x128xf32>
    %9 = arith.addf %6, %8 : vector<16x128xf32>
    %cst_10 = arith.constant 0.000000e+00 : f32
    %10 = vector.broadcast %cst_10 : f32 to vector<16x128xf32>
    %11 = arith.maximumf %9, %10 : vector<16x128xf32>
    %c0_11 = arith.constant 0 : index
    %c0_12 = arith.constant 0 : index
    %12 = vector.load %arg6[%c0_11, %c0_12] : memref<1x128xf32, #tpu.memory_space<vmem>>, vector<1x128xf32>
    %13 = vector.broadcast %12 : vector<1x128xf32> to vector<16x128xf32>
    %14 = arith.mulf %11, %13 : vector<16x128xf32>
    %cst_13 = arith.constant dense<0.000000e+00> : vector<16xf32>
    %15 = vector.multi_reduction <add>, %14, %cst_13 [1] : vector<16x128xf32> to vector<16xf32>
    %16 = vector.shape_cast %15 : vector<16xf32> to vector<16x1xf32>
    %c0_14 = arith.constant 0 : index
    %c0_15 = arith.constant 0 : index
    %17 = vector.load %arg7[%c0_14, %c0_15] : memref<1x1xf32, #tpu.memory_space<vmem>>, vector<1x1xf32>
    %18 = vector.broadcast %17 : vector<1x1xf32> to vector<16x1xf32>
    %19 = arith.addf %16, %18 : vector<16x1xf32>
    %20 = math.absf %19 : vector<16x1xf32>
    %cst_16 = arith.constant 0.000000e+00 : f32
    %21 = vector.broadcast %cst_16 : f32 to vector<16x1xf32>
    %22 = arith.subf %21, %20 : vector<16x1xf32>
    %23 = math.exp %22 : vector<16x1xf32>
    %cst_17 = arith.constant 1.000000e+00 : f32
    %24 = vector.broadcast %cst_17 : f32 to vector<16x1xf32>
    %25 = arith.addf %24, %23 : vector<16x1xf32>
    %26 = tpu.reciprocal %25 : vector<16x1xf32> -> vector<16x1xf32>
    %cst_18 = arith.constant 0.000000e+00 : f32
    %27 = vector.broadcast %cst_18 : f32 to vector<16x1xf32>
    %28 = arith.cmpf oge, %19, %27 : vector<16x1xf32>
    %29 = arith.mulf %23, %26 : vector<16x1xf32>
    %30 = arith.select %28, %26, %29 : vector<16x1xi1>, vector<16x1xf32>
    %c0_19 = arith.constant 0 : index
    %c0_20 = arith.constant 0 : index
    %31 = vector.load %arg8[%c0_19, %c0_20] : memref<16x1xf32, #tpu.memory_space<vmem>>, vector<16x1xf32>
    tpu.vector_store %arg8[%c0_19, %c0_20], %30 {strides = array<i32>} : memref<16x1xf32, #tpu.memory_space<vmem>>, vector<16x1xf32>,
    return
  }
  func.func @transform_0(%arg0: i32) -> (i32, i32) {
    %c0_i32 = arith.constant 0 : i32
    %c0_i32_0 = arith.constant 0 : i32
    return %arg0, %c0_i32 : i32, i32
  }
  func.func @transform_1(%arg0: i32) -> (i32, i32) {
    %c0_i32 = arith.constant 0 : i32
    %c0_i32_0 = arith.constant 0 : i32
    return %arg0, %c0_i32 : i32, i32
  }
  func.func @transform_2(%arg0: i32) -> (i32, i32) {
    %c0_i32 = arith.constant 0 : i32
    %c0_i32_0 = arith.constant 0 : i32
    %c0_i32_1 = arith.constant 0 : i32
    return %c0_i32, %c0_i32_0 : i32, i32
  }
  func.func @transform_3(%arg0: i32) -> (i32, i32) {
    %c0_i32 = arith.constant 0 : i32
    %c0_i32_0 = arith.constant 0 : i32
    %c0_i32_1 = arith.constant 0 : i32
    return %c0_i32, %c0_i32_0 : i32, i32
  }
  func.func @transform_4(%arg0: i32) -> (i32, i32) {
    %c0_i32 = arith.constant 0 : i32
    %c0_i32_0 = arith.constant 0 : i32
    %c0_i32_1 = arith.constant 0 : i32
    return %c0_i32, %c0_i32_0 : i32, i32
  }
  func.func @transform_5(%arg0: i32) -> (i32, i32) {
    %c0_i32 = arith.constant 0 : i32
    %c0_i32_0 = arith.constant 0 : i32
    %c0_i32_1 = arith.constant 0 : i32
    return %c0_i32, %c0_i32_0 : i32, i32
  }
  func.func @transform_6(%arg0: i32) -> (i32, i32) {
    %c0_i32 = arith.constant 0 : i32
    %c0_i32_0 = arith.constant 0 : i32
    %c0_i32_1 = arith.constant 0 : i32
    return %c0_i32, %c0_i32_0 : i32, i32
  }
  func.func @transform_7(%arg0: i32) -> (i32, i32) {
    %c0_i32 = arith.constant 0 : i32
    %c0_i32_0 = arith.constant 0 : i32
    return %arg0, %c0_i32 : i32, i32
  }
}

</mosaic_0001>

<llo_original>
// kernel: discriminator_forward.1
$region0: #{discriminator_forward.1}
  #allocation0 [shape = 'u32[]', space=smem, size = 0x4, offset = 0x4, fixed_abs, tag = 'smem constant byte address 0x4 - core index']
  #allocation1 [shape = 'u32[72,128]{1,0:T(1,128)}', space=vmem, size = 0x9000, scoped, tag = 'internal scratch']
  #allocation2 [shape = 'f32[1,1]{1,0:T(1,128)S(1)}', space=vmem, size = 0x200, scoped, tag = 'scoped memory for discriminator_forward.1']
  %s0 = inlined_call_operand.vmem [shape: f32[48,4], index: 0, kind: input, shape index: {}]
  %s1 = inlined_call_operand.vmem [shape: f32[48,8], index: 1, kind: input, shape index: {}]
  %s2 = inlined_call_operand.vmem [shape: f32[4,128], index: 2, kind: input, shape index: {}]
  %s3 = inlined_call_operand.vmem [shape: f32[8,128], index: 3, kind: input, shape index: {}]
  %s4 = inlined_call_operand.vmem [shape: f32[1,128], index: 4, kind: input, shape index: {}]
  %s5 = inlined_call_operand.vmem [shape: f32[1,128], index: 5, kind: input, shape index: {}]
  %s6 = inlined_call_operand.<no memory space> [shape: f32[1,1], index: 6, kind: input, shape index: {}]
  %s7 = inlined_call_operand.vmem [shape: f32[48,1], index: 7, kind: output, shape index: {}]
  %s8 = sld [smem:[#allocation0]]
  $region61: #{discriminator_forward.1} parent=0
    _
  %s10 = ssub.s32 1, %s8
  %s11 = scalar_select 0, %s10, %s8
  %v12 = vstv %s6
  %13 = vst [vmem:[#allocation2] sm:$0x1] %v12
  loop: start=0, step=1, limit=5
  $region2: #{discriminator_forward.1} parent=0 // loop_pre_header
    _
  $region3: #{discriminator_forward.1} parent=0 // loop_header
    %s15 = sphi 0, %s19
    %p16 = scmp.ge.s32.totalorder %s15, 5
    %s25 = sphi 0, %s27
    %s28 = sphi 0, %s25
    %s29 = sphi 0, %s28
    %s45 = sphi 0, %s29
    %s51 = sphi 0, %s53
    %s54 = sphi 0, %s51
    %s55 = sphi 0, %s54
    %s71 = sphi 0, %s55
    %s75 = sphi 0, %s75
    %s77 = sphi 0, %s75
    %s78 = sphi 0, %s77
    %s92 = sphi 0, %s78
    %s96 = sphi 0, %s96
    %s98 = sphi 0, %s96
    %s99 = sphi 0, %s98
    %s113 = sphi 0, %s99
    %s117 = sphi 0, %s117
    %s119 = sphi 0, %s117
    %s120 = sphi 0, %s119
    %s134 = sphi 0, %s120
    %s138 = sphi 0, %s138
    %s140 = sphi 0, %s138
    %s141 = sphi 0, %s140
    %s155 = sphi 0, %s141
    %s159 = sphi 0, %s159
    %s161 = sphi 0, %s159
    %s162 = sphi 0, %s161
    %s176 = sphi 0, %s162
    %s182 = sphi 0, %s184
    %s185 = sphi 0, %s182
    %s186 = sphi 0, %s185
    %s202 = sphi 0, %s186
  $region4: #{discriminator_forward.1} parent=0 // loop_header_branch
    %18 = sbr.rel (%p16) target = $region8
  $region5: #{discriminator_forward.1} parent=0 // loop_body
    %s20 = ssub.s32 %s15, 1
    %s21 = ssub.s32 %s15, 2
    %s22 = sadd.s32 %s15, 1
    %s23 = ssub.s32 %s15, %s22
    %p24 = scmp.eq.s32.totalorder %s23, 0
    %s26 = sadd.s32 %s25, 1
    %s27 = scalar_select %p24, %s25, %s26
    %p30 = pneg %p24
    %p31 = scmp.eq.s32.totalorder %s15, 2
    %p32 = por %p30, %p31
    %p33 = scmp.ne.s32.totalorder %s25, %s28
    %p34 = scmp.eq.s32.totalorder %s15, 0
    %p35 = por %p33, %p34
    %p36 = scmp.ne.s32.totalorder %s25, %s28
    %p37 = scmp.eq.s32.totalorder %s20, 2
    %p38 = por %p36, %p37
    %p39 = scmp.ne.s32.totalorder %s28, %s29
    %p40 = scmp.eq.s32.totalorder %s20, 0
    %p41 = por %p39, %p40
    %p42 = scmp.ne.s32.totalorder %s28, %s29
    %p43 = scmp.eq.s32.totalorder %s21, 2
    %p44 = por %p42, %p43
    %p46 = scmp.ne.s32.totalorder %s29, %s45
    %p47 = scmp.eq.s32.totalorder %s21, 0
    %p48 = por %p46, %p47
    %s49 = ssub.s32 %s15, %s22
    %p50 = scmp.eq.s32.totalorder %s49, 0
    %s52 = sadd.s32 %s51, 1
    %s53 = scalar_select %p50, %s51, %s52
    %p56 = pneg %p50
    %p57 = scmp.eq.s32.totalorder %s15, 2
    %p58 = por %p56, %p57
    %p59 = scmp.ne.s32.totalorder %s51, %s54
    %p60 = scmp.eq.s32.totalorder %s15, 0
    %p61 = por %p59, %p60
    %p62 = scmp.ne.s32.totalorder %s51, %s54
    %p63 = scmp.eq.s32.totalorder %s20, 2
    %p64 = por %p62, %p63
    %p65 = scmp.ne.s32.totalorder %s54, %s55
    %p66 = scmp.eq.s32.totalorder %s20, 0
    %p67 = por %p65, %p66
    %p68 = scmp.ne.s32.totalorder %s54, %s55
    %p69 = scmp.eq.s32.totalorder %s21, 2
    %p70 = por %p68, %p69
    %p72 = scmp.ne.s32.totalorder %s55, %s71
    %p73 = scmp.eq.s32.totalorder %s21, 0
    %p74 = por %p72, %p73
    %s76 = sadd.s32 %s75, 1
    %p79 = scmp.eq.s32.totalorder %s15, 2
    %p80 = scmp.ne.s32.totalorder %s75, %s77
    %p81 = scmp.eq.s32.totalorder %s15, 0
    %p82 = por %p80, %p81
    %p83 = scmp.ne.s32.totalorder %s75, %s77
    %p84 = scmp.eq.s32.totalorder %s20, 2
    %p85 = por %p83, %p84
    %p86 = scmp.ne.s32.totalorder %s77, %s78
    %p87 = scmp.eq.s32.totalorder %s20, 0
    %p88 = por %p86, %p87
    %p89 = scmp.ne.s32.totalorder %s77, %s78
    %p90 = scmp.eq.s32.totalorder %s21, 2
    %p91 = por %p89, %p90
    %p93 = scmp.ne.s32.totalorder %s78, %s92
    %p94 = scmp.eq.s32.totalorder %s21, 0
    %p95 = por %p93, %p94
    %s97 = sadd.s32 %s96, 1
    %p100 = scmp.eq.s32.totalorder %s15, 2
    %p101 = scmp.ne.s32.totalorder %s96, %s98
    %p102 = scmp.eq.s32.totalorder %s15, 0
    %p103 = por %p101, %p102
    %p104 = scmp.ne.s32.totalorder %s96, %s98
    %p105 = scmp.eq.s32.totalorder %s20, 2
    %p106 = por %p104, %p105
    %p107 = scmp.ne.s32.totalorder %s98, %s99
    %p108 = scmp.eq.s32.totalorder %s20, 0
    %p109 = por %p107, %p108
    %p110 = scmp.ne.s32.totalorder %s98, %s99
    %p111 = scmp.eq.s32.totalorder %s21, 2
    %p112 = por %p110, %p111
    %p114 = scmp.ne.s32.totalorder %s99, %s113
    %p115 = scmp.eq.s32.totalorder %s21, 0
    %p116 = por %p114, %p115
    %s118 = sadd.s32 %s117, 1
    %p121 = scmp.eq.s32.totalorder %s15, 2
    %p122 = scmp.ne.s32.totalorder %s117, %s119
    %p123 = scmp.eq.s32.totalorder %s15, 0
    %p124 = por %p122, %p123
    %p125 = scmp.ne.s32.totalorder %s117, %s119
    %p126 = scmp.eq.s32.totalorder %s20, 2
    %p127 = por %p125, %p126
    %p128 = scmp.ne.s32.totalorder %s119, %s120
    %p129 = scmp.eq.s32.totalorder %s20, 0
    %p130 = por %p128, %p129
    %p131 = scmp.ne.s32.totalorder %s119, %s120
    %p132 = scmp.eq.s32.totalorder %s21, 2
    %p133 = por %p131, %p132
    %p135 = scmp.ne.s32.totalorder %s120, %s134
    %p136 = scmp.eq.s32.totalorder %s21, 0
    %p137 = por %p135, %p136
    %s139 = sadd.s32 %s138, 1
    %p142 = scmp.eq.s32.totalorder %s15, 2
    %p143 = scmp.ne.s32.totalorder %s138, %s140
    %p144 = scmp.eq.s32.totalorder %s15, 0
    %p145 = por %p143, %p144
    %p146 = scmp.ne.s32.totalorder %s138, %s140
    %p147 = scmp.eq.s32.totalorder %s20, 2
    %p148 = por %p146, %p147
    %p149 = scmp.ne.s32.totalorder %s140, %s141
    %p150 = scmp.eq.s32.totalorder %s20, 0
    %p151 = por %p149, %p150
    %p152 = scmp.ne.s32.totalorder %s140, %s141
    %p153 = scmp.eq.s32.totalorder %s21, 2
    %p154 = por %p152, %p153
    %p156 = scmp.ne.s32.totalorder %s141, %s155
    %p157 = scmp.eq.s32.totalorder %s21, 0
    %p158 = por %p156, %p157
    %s160 = sadd.s32 %s159, 1
    %p163 = scmp.eq.s32.totalorder %s15, 2
    %p164 = scmp.ne.s32.totalorder %s159, %s161
    %p165 = scmp.eq.s32.totalorder %s15, 0
    %p166 = por %p164, %p165
    %p167 = scmp.ne.s32.totalorder %s159, %s161
    %p168 = scmp.eq.s32.totalorder %s20, 2
    %p169 = por %p167, %p168
    %p170 = scmp.ne.s32.totalorder %s161, %s162
    %p171 = scmp.eq.s32.totalorder %s20, 0
    %p172 = por %p170, %p171
    %p173 = scmp.ne.s32.totalorder %s161, %s162
    %p174 = scmp.eq.s32.totalorder %s21, 2
    %p175 = por %p173, %p174
    %p177 = scmp.ne.s32.totalorder %s162, %s176
    %p178 = scmp.eq.s32.totalorder %s21, 0
    %p179 = por %p177, %p178
    %s180 = ssub.s32 %s15, %s22
    %p181 = scmp.eq.s32.totalorder %s180, 0
    %s183 = sadd.s32 %s182, 1
    %s184 = scalar_select %p181, %s182, %s183
    %p187 = pneg %p181
    %p188 = scmp.eq.s32.totalorder %s15, 2
    %p189 = por %p187, %p188
    %p190 = scmp.ne.s32.totalorder %s182, %s185
    %p191 = scmp.eq.s32.totalorder %s15, 0
    %p192 = por %p190, %p191
    %p193 = scmp.ne.s32.totalorder %s182, %s185
    %p194 = scmp.eq.s32.totalorder %s20, 2
    %p195 = por %p193, %p194
    %p196 = scmp.ne.s32.totalorder %s185, %s186
    %p197 = scmp.eq.s32.totalorder %s20, 0
    %p198 = por %p196, %p197
    %p199 = scmp.ne.s32.totalorder %s185, %s186
    %p200 = scmp.eq.s32.totalorder %s21, 2
    %p201 = por %p199, %p200
    %p203 = scmp.ne.s32.totalorder %s186, %s202
    %p204 = scmp.eq.s32.totalorder %s21, 0
    %p205 = por %p203, %p204
    %p206 = scmp.le.s32.totalorder 1, %s15
    %p207 = scmp.lt.s32.totalorder %s15, 4
    %p208 = pnand %p206, %p207
    %p209 = pneg %p208
    // Predicated region
    $region9: #{discriminator_forward.1} parent=5 // pred_check
      _
    $region10: #{discriminator_forward.1} parent=5 // pred_check_branch
      %211 = sbr.rel (%p208) target = $region12
    $region11: #{discriminator_forward.1} parent=5 // pred_region
      %s212 = ssub.s32 %s15, 1
      // Predicated region
      $region13: #{discriminator_forward.1} parent=11 // pred_check
        %p213 = pneg %p88
      $region14: #{discriminator_forward.1} parent=11 // pred_check_branch
        %215 = sbr.rel (%p213) target = $region16
      $region15: #{discriminator_forward.1} parent=11 // pred_region
        _
      $region16: #{discriminator_forward.1} parent=11 // pred_fallthru
        _
      // Predicated region
      $region17: #{discriminator_forward.1} parent=11 // pred_check
        %p216 = pneg %p109
      $region18: #{discriminator_forward.1} parent=11 // pred_check_branch
        %218 = sbr.rel (%p216) target = $region20
      $region19: #{discriminator_forward.1} parent=11 // pred_region
        _
      $region20: #{discriminator_forward.1} parent=11 // pred_fallthru
        _
      // Predicated region
      $region21: #{discriminator_forward.1} parent=11 // pred_check
        %p219 = pneg %p130
      $region22: #{discriminator_forward.1} parent=11 // pred_check_branch
        %221 = sbr.rel (%p219) target = $region24
      $region23: #{discriminator_forward.1} parent=11 // pred_region
        _
      $region24: #{discriminator_forward.1} parent=11 // pred_fallthru
        _
      // Predicated region
      $region25: #{discriminator_forward.1} parent=11 // pred_check
        %p222 = pneg %p151
      $region26: #{discriminator_forward.1} parent=11 // pred_check_branch
        %224 = sbr.rel (%p222) target = $region28
      $region27: #{discriminator_forward.1} parent=11 // pred_region
        _
      $region28: #{discriminator_forward.1} parent=11 // pred_fallthru
        _
      // Predicated region
      $region29: #{discriminator_forward.1} parent=11 // pred_check
        %p225 = pneg %p172
      $region30: #{discriminator_forward.1} parent=11 // pred_check_branch
        %227 = sbr.rel (%p225) target = $region32
      $region31: #{discriminator_forward.1} parent=11 // pred_region
        _
      $region32: #{discriminator_forward.1} parent=11 // pred_fallthru
        _
    $region12: #{discriminator_forward.1} parent=5 // pred_fallthru
      _
    %p228 = scmp.lt.s32.totalorder %s15, 3
    // Predicated region
    $region33: #{discriminator_forward.1} parent=5 // pred_check
      %p229 = pneg %p228
    $region34: #{discriminator_forward.1} parent=5 // pred_check_branch
      %231 = sbr.rel (%p229) target = $region36
    $region35: #{discriminator_forward.1} parent=5 // pred_region
      // Predicated region
      $region37: #{discriminator_forward.1} parent=35 // pred_check
        %p232 = pneg %p35
      $region38: #{discriminator_forward.1} parent=35 // pred_check_branch
        %234 = sbr.rel (%p232) target = $region40
      $region39: #{discriminator_forward.1} parent=35 // pred_region
        %s235 = smul.u32 2, %s15
        %p236 = scmp.lt.s32.totalorder %s235, 5
        %s237 = scalar_select %p236, %s235, 5
        %s238 = smul.addr %s237, 8
        %s239 = scalar_lea.vmem %s0, %s238
        %s240 = smul.u32 2, %s15
      $region40: #{discriminator_forward.1} parent=35 // pred_fallthru
        _
      // Predicated region
      $region41: #{discriminator_forward.1} parent=35 // pred_check
        %p241 = pneg %p61
      $region42: #{discriminator_forward.1} parent=35 // pred_check_branch
        %243 = sbr.rel (%p241) target = $region44
      $region43: #{discriminator_forward.1} parent=35 // pred_region
        %s244 = smul.u32 2, %s15
        %p245 = scmp.lt.s32.totalorder %s244, 5
        %s246 = scalar_select %p245, %s244, 5
        %s247 = smul.addr %s246, 8
        %s248 = scalar_lea.vmem %s1, %s247
        %s249 = smul.u32 2, %s15
      $region44: #{discriminator_forward.1} parent=35 // pred_fallthru
        _
    $region36: #{discriminator_forward.1} parent=5 // pred_fallthru
      _
    %p250 = scmp.le.s32.totalorder 1, %s15
    %p251 = scmp.lt.s32.totalorder %s15, 4
    %p252 = pnand %p250, %p251
    %p253 = pneg %p252
    // Predicated region
    $region45: #{discriminator_forward.1} parent=5 // pred_check
      _
    $region46: #{discriminator_forward.1} parent=5 // pred_check_branch
      %255 = sbr.rel (%p252) target = $region48
    $region47: #{discriminator_forward.1} parent=5 // pred_region
      %s256 = ssub.s32 %s15, 1
      %s257 = smul.u32 2, %s20
      %p258 = scmp.lt.s32.totalorder %s257, 5
      %s259 = scalar_select %p258, %s257, 5
      %s260 = smul.addr %s259, 8
      %s261 = scalar_lea.vmem %s0, %s260
      %p262 = pneg %p41
      %p263 = pneg %p38
      %s264 = smul.u32 2, %s20
      %p265 = scmp.lt.s32.totalorder %s264, 5
      %s266 = scalar_select %p265, %s264, 5
      %s267 = smul.addr %s266, 8
      %s268 = scalar_lea.vmem %s1, %s267
      %p269 = pneg %p67
      %p270 = pneg %p64
      %p271 = pneg %p88
      %p272 = pneg %p85
      %p273 = pneg %p109
      %p274 = pneg %p106
      %p275 = pneg %p130
      %p276 = pneg %p127
      %p277 = pneg %p151
      %p278 = pneg %p148
      %p279 = pneg %p172
      %p280 = pneg %p169
      %p281 = pneg %p198
      %p282 = pneg %p195
      %s283 = smul.u32 2, %s20
      %p284 = scmp.lt.s32.totalorder %s283, 5
      %s285 = scalar_select %p284, %s283, 5
      %s286 = smul.addr %s285, 8
      %s287 = scalar_lea.vmem %s7, %s286
      %s288 = smul.u32 2, %s20
      %p289 = scmp.lt.s32.totalorder %s288, 5
      %s290 = scalar_select %p289, %s288, 5
      %s291 = smul.addr %s290, 8
      %s292 = scalar_lea.vmem %s0, %s291
      %s293 = smul.u32 2, %s20
      %s294 = smul.u32 2, %s20
      %p295 = scmp.lt.s32.totalorder %s294, 5
      %s296 = scalar_select %p295, %s294, 5
      %s297 = smul.addr %s296, 8
      %s298 = scalar_lea.vmem %s1, %s297
      %s299 = smul.u32 2, %s20
      %s300 = smul.u32 2, %s20
      %p301 = scmp.lt.s32.totalorder %s300, 5
      %s302 = scalar_select %p301, %s300, 5
      %s303 = smul.addr %s302, 8
      %s304 = scalar_lea.vmem %s7, %s303
      %s305 = smul.u32 2, %s20
      %v306 = vld [vmem:[%s292] sm:$0xff]
      %v307 = vld [vmem:[%s292 + $0x8] sm:$0xff]
      %v308 = vld [vmem:[%s2] sm:$0xf]
      %v309 = vld [vmem:[%s298] sm:$0xff]
      %v310 = vld [vmem:[%s298 + $0x8] sm:$0xff]
      %v311 = vld [vmem:[%s3] sm:$0xff]
      %vm312 = vcmask 64512
      %v314 = vsel %vm312, %v309, 0
      %v317 = vsel %vm312, %v310, 0
      %319 = vmatpush.msra.mxu0 0.0
      %320 = vmatpush.msra.mxu0 0.0
      %321 = vmatpush.msra.mxu0 0.0
      %322 = vmatpush.msra.mxu0 0.0
      %323 = vmatpush.msra.mxu0 0.0
      %324 = vmatpush.msra.mxu0 0.0
      %325 = vmatpush.msra.mxu0 0.0
      %326 = vmatpush.msra.mxu0 0.0
      %327 = vmatpush.msra.mxu0 0.0
      %328 = vmatpush.msra.mxu0 0.0
      %329 = vmatpush.msra.mxu0 0.0
      %330 = vmatpush.msra.mxu0 0.0
      %331 = vmatpush.msra.mxu0 0.0
      %332 = vmatpush.msra.mxu0 0.0
      %333 = vmatpush.msra.mxu0 0.0
      %334 = vmatpush.msra.mxu0 %v311
      %335 = vmatmul.f32.gmra.mxu0 %v314
      %v336 = vpop.f32.mrf.mxu0
      %v337 = vadd.f32 0.0, %v336
      %338 = vmatmul.f32.gmra.mxu0 %v317
      %v339 = vpop.f32.mrf.mxu0
      %v340 = vadd.f32 0.0, %v339
      %341 = vdwg.mxu0
      %vm342 = vcmask 31744
      %v344 = vsel %vm342, %v306, 0
      %v347 = vsel %vm342, %v307, 0
      %vm349 = vcmask 1043456
      %v351 = vsel %vm349, %v308, 0
      %353 = vmatpush.msra.mxu0 0.0
      %354 = vmatpush.msra.mxu0 0.0
      %355 = vmatpush.msra.mxu0 0.0
      %356 = vmatpush.msra.mxu0 0.0
      %357 = vmatpush.msra.mxu0 0.0
      %358 = vmatpush.msra.mxu0 0.0
      %359 = vmatpush.msra.mxu0 0.0
      %360 = vmatpush.msra.mxu0 0.0
      %361 = vmatpush.msra.mxu0 0.0
      %362 = vmatpush.msra.mxu0 0.0
      %363 = vmatpush.msra.mxu0 0.0
      %364 = vmatpush.msra.mxu0 0.0
      %365 = vmatpush.msra.mxu0 0.0
      %366 = vmatpush.msra.mxu0 0.0
      %367 = vmatpush.msra.mxu0 0.0
      %368 = vmatpush.msra.mxu0 %v351
      %369 = vmatmul.f32.gmra.mxu0 %v344
      %v370 = vpop.f32.mrf.mxu0
      %v371 = vadd.f32 %v337, %v370
      %372 = vmatmul.f32.gmra.mxu0 %v347
      %v373 = vpop.f32.mrf.mxu0
      %v374 = vadd.f32 %v340, %v373
      %375 = vdwg.mxu0
      %v376 = vld [vmem:[%s4] sm:$0x1]
      %v378 = vperm.slane %v376, 0
      %v380 = vadd.f32 %v371, %v378
      %v381 = vadd.f32 %v374, %v378
      %v382 = vmax.f32 %v380, 0.0
      %v383 = vmax.f32 %v381, 0.0
      %v384 = vld [vmem:[%s5] sm:$0x1]
      %v386 = vperm.slane %v384, 0
      %v388 = vmul.f32 %v382, %v386
      %v389 = vmul.f32 %v383, %v386
      %390 = vadd.xlane.f32.xlu0 %v388
      %v391 = vpop.xlane.xlu0 %390
      %392 = vadd.xlane.f32.xlu0 %v389
      %v393 = vpop.xlane.xlu0 %392
      %v394 = vld [vmem:[#allocation2] sm:$0x1]
      %v396 = vperm.slane %v394, 0
      %v398 = vadd.f32 %v391, %v396
      %v399 = vadd.f32 %v393, %v396
      %v400 = vand.u32 2147483647, %v398
      %v401 = vand.u32 2147483647, %v399
      %v402 = vsub.f32 0.0, %v400
      %v403 = vsub.f32 0.0, %v401
      %v404 = vmul.f32 %v402, 1.442695
      %v405 = vpow.pop %v404
      %v406 = vmul.f32 %v403, 1.442695
      %v407 = vpow.pop %v406
      %v408 = vadd.f32 %v405, 1.0
      %v409 = vadd.f32 %v407, 1.0
      %v410 = vrcp.pop %v408
      %v411 = vmul.f32 %v408, %v410
      %v412 = vsub.f32 1.0, %v411
      %v413 = vmul.f32 %v410, %v412
      %v414 = vadd.f32 %v410, %v413
      %vm415 = vweird.f32 %v408
      %vm416 = vweird.f32 %v410
      %vm417 = vmor %vm415, %vm416
      %v418 = vsel %vm417, %v410, %v414
      %v419 = vand.u32 2147483647, %v408
      %vm420 = vcmp.eq.f32.partialorder %v419, 8.507059e+37
      %v421 = vand.u32 %v408, 2147483648
      %v422 = vor.u32 1.1754944e-38, %v421
      %v423 = vsel %vm420, %v422, %v418
      %v424 = vrcp.pop %v409
      %v425 = vmul.f32 %v409, %v424
      %v426 = vsub.f32 1.0, %v425
      %v427 = vmul.f32 %v424, %v426
      %v428 = vadd.f32 %v424, %v427
      %vm429 = vweird.f32 %v409
      %vm430 = vweird.f32 %v424
      %vm431 = vmor %vm429, %vm430
      %v432 = vsel %vm431, %v424, %v428
      %v433 = vand.u32 2147483647, %v409
      %vm434 = vcmp.eq.f32.partialorder %v433, 8.507059e+37
      %v435 = vand.u32 %v409, 2147483648
      %v436 = vor.u32 1.1754944e-38, %v435
      %v437 = vsel %vm434, %v436, %v432
      %vm438 = vcmp.ge.f32.partialorder %v398, 0.0
      %vm439 = vcmp.ge.f32.partialorder %v399, 0.0
      %v440 = vmul.f32 %v405, %v423
      %v441 = vmul.f32 %v407, %v437
      %v442 = vsel %vm438, %v423, %v440
      %v443 = vsel %vm439, %v437, %v441
      %vm444 = vcmask 7168
      %445 = vst.msk [vmem:[%s304] sm:$0xff] %vm444, %v442
      %446 = vst.msk [vmem:[%s304 + $0x8] sm:$0xff] %vm444, %v443
      %s447 = smul.u32 2, %s20
      %p448 = scmp.lt.s32.totalorder %s447, 5
      %s449 = scalar_select %p448, %s447, 5
      %s450 = smul.addr %s449, 8
      %s451 = scalar_lea.vmem %s7, %s450
      // Predicated region
      $region49: #{discriminator_forward.1} parent=47 // pred_check
        %p452 = pneg %p195
      $region50: #{discriminator_forward.1} parent=47 // pred_check_branch
        %454 = sbr.rel (%p452) target = $region52
      $region51: #{discriminator_forward.1} parent=47 // pred_region
        %s455 = smul.u32 2, %s20
      $region52: #{discriminator_forward.1} parent=47 // pred_fallthru
        _
    $region48: #{discriminator_forward.1} parent=5 // pred_fallthru
      _
    %p456 = scmp.le.s32.totalorder 2, %s15
    // Predicated region
    $region53: #{discriminator_forward.1} parent=5 // pred_check
      %p457 = pneg %p456
    $region54: #{discriminator_forward.1} parent=5 // pred_check_branch
      %459 = sbr.rel (%p457) target = $region56
    $region55: #{discriminator_forward.1} parent=5 // pred_region
      %s460 = ssub.s32 %s15, 2
      // Predicated region
      $region57: #{discriminator_forward.1} parent=55 // pred_check
        %p461 = pneg %p201
      $region58: #{discriminator_forward.1} parent=55 // pred_check_branch
        %463 = sbr.rel (%p461) target = $region60
      $region59: #{discriminator_forward.1} parent=55 // pred_region
        %s464 = smul.u32 2, %s21
        %p465 = scmp.lt.s32.totalorder %s464, 5
        %s466 = scalar_select %p465, %s464, 5
        %s467 = smul.addr %s466, 8
        %s468 = scalar_lea.vmem %s7, %s467
      $region60: #{discriminator_forward.1} parent=55 // pred_fallthru
        _
    $region56: #{discriminator_forward.1} parent=5 // pred_fallthru
      _
  $region6: #{discriminator_forward.1} parent=0 // loop_footer
    %s19 = sadd.s32 1, %s15
  $region7: #{discriminator_forward.1} parent=0 // loop_footer_branch
    %14 = sbr.rel target = $region3
  $region8: #{discriminator_forward.1} parent=0 // loop_exit
    _

</llo_original>
